<compile_context>
chip_gen: v7x
topology: tpu7x:2x2x1
jax: 0.10.0
libtpu: 0.0.40
codegen_flags: <defaults>
</compile_context>

<pallas_src>
import jax
import jax.numpy as jnp
from jax.experimental import pallas as pl
from jax.experimental.pallas import tpu as pltpu

_EPS = 1e-9
_LANES = 128
_TILE_ROWS = 512  # 512*128*3 ch * 4 B ~= 0.75 MB per block


def _round_up(x, m):
    return ((x + m - 1) // m) * m


def _rgb2hsv_kernel(zero_ref, x_ref, o_ref):
    # zero_ref: (1,) SMEM scalar -- the module's frozen `comparison_zero` parameter.
    comparison_zero = zero_ref[0]

    # Load + clamp each channel directly as a (TILE_ROWS, 128) slab.
    r = jnp.clip(x_ref[0, 0, :, :], _EPS, 1.0)
    g = jnp.clip(x_ref[0, 1, :, :], _EPS, 1.0)
    b = jnp.clip(x_ref[0, 2, :, :], _EPS, 1.0)

    # channel-wise max / min / delta
    mx = jnp.maximum(jnp.maximum(r, g), b)
    mn = jnp.minimum(jnp.minimum(r, g), b)
    df = mx - mn

    # non_nan_inv(df): 1/df where df != 0 else 0; mask computed once, reused.
    df_zero = df == 0.0
    df_inv = jnp.where(df_zero, 0.0, 1.0 / jnp.where(df_zero, 1.0, df))

    # NOTE: ties intentionally sum contributions (matches the PyTorch module).
    r_is_mx = (r == mx).astype(jnp.float32)
    g_is_mx = (g == mx).astype(jnp.float32)
    b_is_mx = (b == mx).astype(jnp.float32)

    h = ((g - b) * df_inv) * r_is_mx \
        + (2.0 + (b - r) * df_inv) * g_is_mx \
        + (4.0 + (r - g) * df_inv) * b_is_mx
    h = jnp.where(df_zero, comparison_zero, h)
    # Folded hue scaling: equivalent to h*60 ; (+360 if negative) ; /360.
    h = h * (1.0 / 6.0)
    h = jnp.where(h < 0.0, h + 1.0, h)

    # Saturation: after the clamp mx >= 1e-9 > 0, so the mx==0 guard is dead.
    s = df * (1.0 / mx)

    # Value
    v = mx

    # Final clamp(., 1e-9, 1.0) applied to the whole HSV image.
    o_ref[0, 0, :, :] = jnp.clip(h, _EPS, 1.0)
    o_ref[0, 1, :, :] = jnp.clip(s, _EPS, 1.0)
    o_ref[0, 2, :, :] = jnp.clip(v, _EPS, 1.0)


def rgb2hsv(img, comparison_zero, tile_rows=_TILE_ROWS):
    """img: (B, 3, H, W) float32 RGB in NCHW. Returns (B, 3, H, W) HSV."""
    B, C, H, W = img.shape
    assert C == 3, "RGB2HSV expects 3 channels"
    HW = H * W

    # Pad HW to a multiple of 128 lanes, then rows to a multiple of the tile.
    hw_pad = _round_up(HW, _LANES)
    rows = hw_pad // _LANES
    tr = min(tile_rows, rows)          # rows < tile -> one full-extent tile
    rows_pad = _round_up(rows, tr)
    total_pad = rows_pad * _LANES

    x = img.reshape(B, C, HW)
    if total_pad != HW:
        # Pad with 1.0: stays in [eps, 1], yields df == 0 which is handled.
        x = jnp.pad(x, ((0, 0), (0, 0), (0, total_pad - HW)),
                    constant_values=1.0)
    x = x.reshape(B, C, rows_pad, _LANES)

    grid = (B, rows_pad // tr)

    out = pl.pallas_call(
        _rgb2hsv_kernel,
        out_shape=jax.ShapeDtypeStruct((B, C, rows_pad, _LANES), jnp.float32),
        grid=grid,
        in_specs=[
            pl.BlockSpec(memory_space=pltpu.MemorySpace.SMEM),     # comparison_zero
            pl.BlockSpec((1, C, tr, _LANES), lambda bi, ti: (bi, 0, ti, 0)),
        ],
        out_specs=pl.BlockSpec((1, C, tr, _LANES), lambda bi, ti: (bi, 0, ti, 0)),
        compiler_params=pltpu.CompilerParams(
            dimension_semantics=("parallel", "parallel")),
    )(comparison_zero, x)

    out = out.reshape(B, C, total_pad)
    if total_pad != HW:
        out = out[:, :, :HW]
    return out.reshape(B, C, H, W)


def _rgb2hsv_ref(img):
    """Pure-JAX reference mirroring the PyTorch forward exactly."""
    img = jnp.clip(img, _EPS, 1.0)
    mx = jnp.max(img, axis=1)
    mn = jnp.min(img, axis=1)
    df = mx - mn
    r, g, b = img[:, 0], img[:, 1], img[:, 2]
    df_inv = jnp.where(df != 0.0, 1.0 / jnp.where(df != 0.0, df, 1.0), 0.0)
    h = ((g - b) * df_inv) * (r == mx) \
        + (2.0 + (b - r) * df_inv) * (g == mx) \
        + (4.0 + (r - g) * df_inv) * (b == mx)
    h = jnp.where(df == 0.0, 0.0, h) * 60.0
    h = jnp.where(h < 0.0, h + 360.0, h) / 360.0
    mx_inv = jnp.where(mx != 0.0, 1.0 / jnp.where(mx != 0.0, mx, 1.0), 0.0)
    s = jnp.where(mx == 0.0, 0.0, df * mx_inv)
    v = mx
    return jnp.clip(jnp.stack([h, s, v], axis=1), _EPS, 1.0)


if __name__ == "__main__":
    key = jax.random.PRNGKey(0)
    # batch=2, channels=3 (RGB), spatial=16x16
    x = jax.random.uniform(key, (2, 3, 16, 16), dtype=jnp.float32)

    # deterministic "parameter" from the module's __init__ (frozen zero scalar)
    comparison_zero = jnp.zeros((1,), dtype=jnp.float32)

    out = rgb2hsv(x, comparison_zero)
    out = jax.block_until_ready(out)

    ref = _rgb2hsv_ref(x)
    assert out.shape == (2, 3, 16, 16)
    assert jnp.allclose(out, ref, atol=1e-6, rtol=1e-6)

    print("KERNEL_OK")
</pallas_src>

<mosaic_0001>
module attributes {stable_mosaic.version = 11 : i64} {
  func.func @_rgb2hsv_kernel(%arg0: i32, %arg1: i32, %arg2: memref<1xf32, #tpu.memory_space<smem>>, %arg3: memref<1x3x2x128xf32, #tpu.memory_space<vmem>>, %arg4: memref<1x3x2x128xf32, #tpu.memory_space<vmem>>) attributes {dimension_semantics = [#tpu.dimension_semantics<parallel>, #tpu.dimension_semantics<parallel>], iteration_bounds = array<i64: 2, 1>, scalar_prefetch = 0 : i64, scratch_operands = 0 : i64, tpu.core_type = #tpu.core_type<tc>, window_params = [{transform_indices = @transform_0, window_bounds = array<i64: 1>}, {transform_indices = @transform_1, window_bounds = array<i64: 1, 3, 2, 128>}, {transform_indices = @transform_2, window_bounds = array<i64: 1, 3, 2, 128>}]} {
    %c0 = arith.constant 0 : index
    %0 = memref.load %arg2[%c0] : memref<1xf32, #tpu.memory_space<smem>>
    %c0_0 = arith.constant 0 : index
    %c0_1 = arith.constant 0 : index
    %c0_2 = arith.constant 0 : index
    %c0_3 = arith.constant 0 : index
    %1 = vector.load %arg3[%c0_0, %c0_1, %c0_2, %c0_3] : memref<1x3x2x128xf32, #tpu.memory_space<vmem>>, vector<1x1x2x128xf32>
    %2 = vector.shape_cast %1 : vector<1x1x2x128xf32> to vector<2x128xf32>
    %cst = arith.constant 9.99999971E-10 : f32
    %cst_4 = arith.constant 1.000000e+00 : f32
    %3 = vector.broadcast %cst : f32 to vector<2x128xf32>
    %4 = arith.maximumf %3, %2 : vector<2x128xf32>
    %5 = vector.broadcast %cst_4 : f32 to vector<2x128xf32>
    %6 = arith.minimumf %5, %4 : vector<2x128xf32>
    %c0_5 = arith.constant 0 : index
    %c1 = arith.constant 1 : index
    %c0_6 = arith.constant 0 : index
    %c0_7 = arith.constant 0 : index
    %7 = vector.load %arg3[%c0_5, %c1, %c0_6, %c0_7] : memref<1x3x2x128xf32, #tpu.memory_space<vmem>>, vector<1x1x2x128xf32>
    %8 = vector.shape_cast %7 : vector<1x1x2x128xf32> to vector<2x128xf32>
    %cst_8 = arith.constant 9.99999971E-10 : f32
    %cst_9 = arith.constant 1.000000e+00 : f32
    %9 = vector.broadcast %cst_8 : f32 to vector<2x128xf32>
    %10 = arith.maximumf %9, %8 : vector<2x128xf32>
    %11 = vector.broadcast %cst_9 : f32 to vector<2x128xf32>
    %12 = arith.minimumf %11, %10 : vector<2x128xf32>
    %c0_10 = arith.constant 0 : index
    %c2 = arith.constant 2 : index
    %c0_11 = arith.constant 0 : index
    %c0_12 = arith.constant 0 : index
    %13 = vector.load %arg3[%c0_10, %c2, %c0_11, %c0_12] : memref<1x3x2x128xf32, #tpu.memory_space<vmem>>, vector<1x1x2x128xf32>
    %14 = vector.shape_cast %13 : vector<1x1x2x128xf32> to vector<2x128xf32>
    %cst_13 = arith.constant 9.99999971E-10 : f32
    %cst_14 = arith.constant 1.000000e+00 : f32
    %15 = vector.broadcast %cst_13 : f32 to vector<2x128xf32>
    %16 = arith.maximumf %15, %14 : vector<2x128xf32>
    %17 = vector.broadcast %cst_14 : f32 to vector<2x128xf32>
    %18 = arith.minimumf %17, %16 : vector<2x128xf32>
    %19 = arith.maximumf %6, %12 : vector<2x128xf32>
    %20 = arith.maximumf %19, %18 : vector<2x128xf32>
    %21 = arith.minimumf %6, %12 : vector<2x128xf32>
    %22 = arith.minimumf %21, %18 : vector<2x128xf32>
    %23 = arith.subf %20, %22 : vector<2x128xf32>
    %cst_15 = arith.constant 0.000000e+00 : f32
    %24 = vector.broadcast %cst_15 : f32 to vector<2x128xf32>
    %25 = arith.cmpf oeq, %23, %24 : vector<2x128xf32>
    %cst_16 = arith.constant 1.000000e+00 : f32
    %26 = vector.broadcast %cst_16 : f32 to vector<2x128xf32>
    %27 = arith.select %25, %26, %23 : vector<2x128xi1>, vector<2x128xf32>
    %cst_17 = arith.constant 1.000000e+00 : f32
    %28 = vector.broadcast %cst_17 : f32 to vector<2x128xf32>
    %29 = arith.divf %28, %27 : vector<2x128xf32>
    %cst_18 = arith.constant 0.000000e+00 : f32
    %30 = vector.broadcast %cst_18 : f32 to vector<2x128xf32>
    %31 = arith.select %25, %30, %29 : vector<2x128xi1>, vector<2x128xf32>
    %32 = arith.cmpf oeq, %6, %20 : vector<2x128xf32>
    %33 = arith.extui %32 : vector<2x128xi1> to vector<2x128xi32>
    %34 = arith.sitofp %33 : vector<2x128xi32> to vector<2x128xf32>
    %35 = arith.cmpf oeq, %12, %20 : vector<2x128xf32>
    %36 = arith.extui %35 : vector<2x128xi1> to vector<2x128xi32>
    %37 = arith.sitofp %36 : vector<2x128xi32> to vector<2x128xf32>
    %38 = arith.cmpf oeq, %18, %20 : vector<2x128xf32>
    %39 = arith.extui %38 : vector<2x128xi1> to vector<2x128xi32>
    %40 = arith.sitofp %39 : vector<2x128xi32> to vector<2x128xf32>
    %41 = arith.subf %12, %18 : vector<2x128xf32>
    %42 = arith.mulf %41, %31 : vector<2x128xf32>
    %43 = arith.mulf %42, %34 : vector<2x128xf32>
    %44 = arith.subf %18, %6 : vector<2x128xf32>
    %45 = arith.mulf %44, %31 : vector<2x128xf32>
    %cst_19 = arith.constant 2.000000e+00 : f32
    %46 = vector.broadcast %cst_19 : f32 to vector<2x128xf32>
    %47 = arith.addf %46, %45 : vector<2x128xf32>
    %48 = arith.mulf %47, %37 : vector<2x128xf32>
    %49 = arith.addf %43, %48 : vector<2x128xf32>
    %50 = arith.subf %6, %12 : vector<2x128xf32>
    %51 = arith.mulf %50, %31 : vector<2x128xf32>
    %cst_20 = arith.constant 4.000000e+00 : f32
    %52 = vector.broadcast %cst_20 : f32 to vector<2x128xf32>
    %53 = arith.addf %52, %51 : vector<2x128xf32>
    %54 = arith.mulf %53, %40 : vector<2x128xf32>
    %55 = arith.addf %49, %54 : vector<2x128xf32>
    %56 = vector.broadcast %0 : f32 to vector<2x128xf32>
    %57 = arith.select %25, %56, %55 : vector<2x128xi1>, vector<2x128xf32>
    %cst_21 = arith.constant 0.166666672 : f32
    %58 = vector.broadcast %cst_21 : f32 to vector<2x128xf32>
    %59 = arith.mulf %57, %58 : vector<2x128xf32>
    %cst_22 = arith.constant 0.000000e+00 : f32
    %60 = vector.broadcast %cst_22 : f32 to vector<2x128xf32>
    %61 = arith.cmpf olt, %59, %60 : vector<2x128xf32>
    %cst_23 = arith.constant 1.000000e+00 : f32
    %62 = vector.broadcast %cst_23 : f32 to vector<2x128xf32>
    %63 = arith.addf %59, %62 : vector<2x128xf32>
    %64 = arith.select %61, %63, %59 : vector<2x128xi1>, vector<2x128xf32>
    %cst_24 = arith.constant 1.000000e+00 : f32
    %65 = vector.broadcast %cst_24 : f32 to vector<2x128xf32>
    %66 = arith.divf %65, %20 : vector<2x128xf32>
    %67 = arith.mulf %23, %66 : vector<2x128xf32>
    %cst_25 = arith.constant 9.99999971E-10 : f32
    %cst_26 = arith.constant 1.000000e+00 : f32
    %68 = vector.broadcast %cst_25 : f32 to vector<2x128xf32>
    %69 = arith.maximumf %68, %64 : vector<2x128xf32>
    %70 = vector.broadcast %cst_26 : f32 to vector<2x128xf32>
    %71 = arith.minimumf %70, %69 : vector<2x128xf32>
    %c0_27 = arith.constant 0 : index
    %c0_28 = arith.constant 0 : index
    %c0_29 = arith.constant 0 : index
    %c0_30 = arith.constant 0 : index
    %72 = vector.load %arg4[%c0_27, %c0_28, %c0_29, %c0_30] : memref<1x3x2x128xf32, #tpu.memory_space<vmem>>, vector<1x1x2x128xf32>
    %73 = vector.shape_cast %72 : vector<1x1x2x128xf32> to vector<2x128xf32>
    %74 = vector.shape_cast %71 : vector<2x128xf32> to vector<1x1x2x128xf32>
    tpu.vector_store %arg4[%c0_27, %c0_28, %c0_29, %c0_30], %74 {strides = array<i32>} : memref<1x3x2x128xf32, #tpu.memory_space<vmem>>, vector<1x1x2x128xf32>,
    %cst_31 = arith.constant 9.99999971E-10 : f32
    %cst_32 = arith.constant 1.000000e+00 : f32
    %75 = vector.broadcast %cst_31 : f32 to vector<2x128xf32>
    %76 = arith.maximumf %75, %67 : vector<2x128xf32>
    %77 = vector.broadcast %cst_32 : f32 to vector<2x128xf32>
    %78 = arith.minimumf %77, %76 : vector<2x128xf32>
    %c0_33 = arith.constant 0 : index
    %c1_34 = arith.constant 1 : index
    %c0_35 = arith.constant 0 : index
    %c0_36 = arith.constant 0 : index
    %79 = vector.load %arg4[%c0_33, %c1_34, %c0_35, %c0_36] : memref<1x3x2x128xf32, #tpu.memory_space<vmem>>, vector<1x1x2x128xf32>
    %80 = vector.shape_cast %79 : vector<1x1x2x128xf32> to vector<2x128xf32>
    %81 = vector.shape_cast %78 : vector<2x128xf32> to vector<1x1x2x128xf32>
    tpu.vector_store %arg4[%c0_33, %c1_34, %c0_35, %c0_36], %81 {strides = array<i32>} : memref<1x3x2x128xf32, #tpu.memory_space<vmem>>, vector<1x1x2x128xf32>,
    %cst_37 = arith.constant 9.99999971E-10 : f32
    %cst_38 = arith.constant 1.000000e+00 : f32
    %82 = vector.broadcast %cst_37 : f32 to vector<2x128xf32>
    %83 = arith.maximumf %82, %20 : vector<2x128xf32>
    %84 = vector.broadcast %cst_38 : f32 to vector<2x128xf32>
    %85 = arith.minimumf %84, %83 : vector<2x128xf32>
    %c0_39 = arith.constant 0 : index
    %c2_40 = arith.constant 2 : index
    %c0_41 = arith.constant 0 : index
    %c0_42 = arith.constant 0 : index
    %86 = vector.load %arg4[%c0_39, %c2_40, %c0_41, %c0_42] : memref<1x3x2x128xf32, #tpu.memory_space<vmem>>, vector<1x1x2x128xf32>
    %87 = vector.shape_cast %86 : vector<1x1x2x128xf32> to vector<2x128xf32>
    %88 = vector.shape_cast %85 : vector<2x128xf32> to vector<1x1x2x128xf32>
    tpu.vector_store %arg4[%c0_39, %c2_40, %c0_41, %c0_42], %88 {strides = array<i32>} : memref<1x3x2x128xf32, #tpu.memory_space<vmem>>, vector<1x1x2x128xf32>,
    return
  }
  func.func @transform_0(%arg0: i32, %arg1: i32) -> i32 {
    %c0_i32 = arith.constant 0 : i32
    %c0_i32_0 = arith.constant 0 : i32
    return %c0_i32 : i32
  }
  func.func @transform_1(%arg0: i32, %arg1: i32) -> (i32, i32, i32, i32) {
    %c0_i32 = arith.constant 0 : i32
    %c0_i32_0 = arith.constant 0 : i32
    %c0_i32_1 = arith.constant 0 : i32
    return %arg0, %c0_i32, %arg1, %c0_i32_0 : i32, i32, i32, i32
  }
  func.func @transform_2(%arg0: i32, %arg1: i32) -> (i32, i32, i32, i32) {
    %c0_i32 = arith.constant 0 : i32
    %c0_i32_0 = arith.constant 0 : i32
    %c0_i32_1 = arith.constant 0 : i32
    return %arg0, %c0_i32, %arg1, %c0_i32_0 : i32, i32, i32, i32
  }
}

</mosaic_0001>

<llo_original>
// kernel: tpu_custom_call.1
$region0: #{tpu_custom_call.1}
  #allocation0 [shape = 'u32[]', space=smem, size = 0x4, offset = 0x4, fixed_abs, tag = 'smem constant byte address 0x4 - core index']
  #allocation1 [shape = 'u32[144,128]{1,0:T(1,128)}', space=vmem, size = 0x12000, scoped, tag = 'internal scratch']
  #allocation2 [shape = 'f32[1]{0:T(128)S(6)}', space=smem, size = 0x200, scoped, tag = 'scoped memory for tpu_custom_call.1']
  %s0 = inlined_call_operand.<no memory space> [shape: f32[1], index: 0, kind: input, shape index: {}]
  %s1 = inlined_call_operand.hbm [shape: f32[2,3,2,128], index: 1, kind: input, shape index: {}]
  %s2 = inlined_call_operand.hbm [shape: f32[2,3,2,128], index: 2, kind: output, shape index: {}]
  %s3 = sld [smem:[#allocation0]]
  $region45: #{tpu_custom_call.1} parent=0
    _
  %s5 = ssub.s32 1, %s3
  %s6 = scalar_select 0, %s5, %s3
  %7 = sst [smem:[#allocation2]] %s0
  $region1: #{tpu_custom_call.1} parent=0
    #allocation3 [shape = 'u8[6144]{0}', space=vmem, size = 0x1800, scoped, tag = 'input window, operand 1']
    #allocation4 [shape = 's32[2]{0}', space=sflag, size = 0x8, scoped, tag = 'scoped memory for tpu_custom_call.1']
    #allocation5 [shape = 's32[2]{0}', space=sflag, size = 0x8, scoped, tag = 'scoped memory for tpu_custom_call.1']
    #allocation6 [shape = 'u8[6144]{0}', space=vmem, size = 0x1800, scoped, tag = 'output window, operand 0']
    %8 = vsyncpa [#allocation4], 0
    %s9 = scalar_lea.sflag [#allocation4], 1
    %10 = vsyncpa %s9, 0
    %11 = vsyncpa [#allocation5], 0
    %s12 = scalar_lea.sflag [#allocation5], 1
    %13 = vsyncpa %s12, 0
    loop: start=0, step=1, limit=4
    $region2: #{tpu_custom_call.1} parent=1 // loop_pre_header
      _
    $region3: #{tpu_custom_call.1} parent=1 // loop_header
      %s15 = sphi 0, %s19
      %p16 = scmp.ge.s32.totalorder %s15, 4
      %s22 = sphi 0, %s34
      %s23 = sphi 0, %s30
      %s24 = sphi 0, %s22
      %s25 = sphi 0, %s23
      %s26 = sphi 0, %s24
      %s27 = sphi 0, %s25
      %s35 = sphi 0, %s35
      %s37 = sphi 0, %s35
      %s38 = sphi 0, %s37
      %s52 = sphi 0, %s38
      %s60 = sphi 0, %s62
      %s63 = sphi 0, %s60
      %s64 = sphi 0, %s63
      %s80 = sphi 0, %s64
      %s88 = sphi 0, %s90
      %s91 = sphi 0, %s88
      %s92 = sphi 0, %s91
      %s108 = sphi 0, %s92
    $region4: #{tpu_custom_call.1} parent=1 // loop_header_branch
      %18 = sbr.rel (%p16) target = $region8
    $region5: #{tpu_custom_call.1} parent=1 // loop_body
      %s20 = ssub.s32 %s15, 1
      %s21 = ssub.s32 %s15, 2
      %s28 = sadd.s32 1, %s23
      %p29 = scmp.ge.s32.totalorder %s28, 1
      %s30 = scalar_select %p29, 0, %s28
      %s31 = sadd.s32 1, %s22
      %s32 = scalar_select %p29, %s31, %s22
      %p33 = scmp.ge.s32.totalorder %s32, 2
      %s34 = scalar_select %p33, 0, %s32
      %s36 = sadd.s32 %s35, 1
      %p39 = scmp.eq.s32.totalorder %s15, 1
      %p40 = scmp.ne.s32.totalorder %s35, %s37
      %p41 = scmp.eq.s32.totalorder %s15, 0
      %p42 = por %p40, %p41
      %p43 = scmp.ne.s32.totalorder %s35, %s37
      %p44 = scmp.eq.s32.totalorder %s20, 1
      %p45 = por %p43, %p44
      %p46 = scmp.ne.s32.totalorder %s37, %s38
      %p47 = scmp.eq.s32.totalorder %s20, 0
      %p48 = por %p46, %p47
      %p49 = scmp.ne.s32.totalorder %s37, %s38
      %p50 = scmp.eq.s32.totalorder %s21, 1
      %p51 = por %p49, %p50
      %p53 = scmp.ne.s32.totalorder %s38, %s52
      %p54 = scmp.eq.s32.totalorder %s21, 0
      %p55 = por %p53, %p54
      %s56 = ssub.s32 %s22, %s34
      %s57 = ssub.s32 %s23, %s30
      %s58 = sor.u32 %s56, %s57
      %p59 = scmp.eq.s32.totalorder %s58, 0
      %s61 = sadd.s32 %s60, 1
      %s62 = scalar_select %p59, %s60, %s61
      %p65 = pneg %p59
      %p66 = scmp.eq.s32.totalorder %s15, 1
      %p67 = por %p65, %p66
      %p68 = scmp.ne.s32.totalorder %s60, %s63
      %p69 = scmp.eq.s32.totalorder %s15, 0
      %p70 = por %p68, %p69
      %p71 = scmp.ne.s32.totalorder %s60, %s63
      %p72 = scmp.eq.s32.totalorder %s20, 1
      %p73 = por %p71, %p72
      %p74 = scmp.ne.s32.totalorder %s63, %s64
      %p75 = scmp.eq.s32.totalorder %s20, 0
      %p76 = por %p74, %p75
      %p77 = scmp.ne.s32.totalorder %s63, %s64
      %p78 = scmp.eq.s32.totalorder %s21, 1
      %p79 = por %p77, %p78
      %p81 = scmp.ne.s32.totalorder %s64, %s80
      %p82 = scmp.eq.s32.totalorder %s21, 0
      %p83 = por %p81, %p82
      %s84 = ssub.s32 %s22, %s34
      %s85 = ssub.s32 %s23, %s30
      %s86 = sor.u32 %s84, %s85
      %p87 = scmp.eq.s32.totalorder %s86, 0
      %s89 = sadd.s32 %s88, 1
      %s90 = scalar_select %p87, %s88, %s89
      %p93 = pneg %p87
      %p94 = scmp.eq.s32.totalorder %s15, 1
      %p95 = por %p93, %p94
      %p96 = scmp.ne.s32.totalorder %s88, %s91
      %p97 = scmp.eq.s32.totalorder %s15, 0
      %p98 = por %p96, %p97
      %p99 = scmp.ne.s32.totalorder %s88, %s91
      %p100 = scmp.eq.s32.totalorder %s20, 1
      %p101 = por %p99, %p100
      %p102 = scmp.ne.s32.totalorder %s91, %s92
      %p103 = scmp.eq.s32.totalorder %s20, 0
      %p104 = por %p102, %p103
      %p105 = scmp.ne.s32.totalorder %s91, %s92
      %p106 = scmp.eq.s32.totalorder %s21, 1
      %p107 = por %p105, %p106
      %p109 = scmp.ne.s32.totalorder %s92, %s108
      %p110 = scmp.eq.s32.totalorder %s21, 0
      %p111 = por %p109, %p110
      %p112 = scmp.le.s32.totalorder 1, %s15
      %p113 = scmp.lt.s32.totalorder %s15, 3
      %p114 = pnand %p112, %p113
      %p115 = pneg %p114
      // Predicated region
      $region9: #{tpu_custom_call.1} parent=5 // pred_check
        _
      $region10: #{tpu_custom_call.1} parent=5 // pred_check_branch
        %117 = sbr.rel (%p114) target = $region12
      $region11: #{tpu_custom_call.1} parent=5 // pred_region
        %s118 = ssub.s32 %s15, 1
        // Predicated region
        $region13: #{tpu_custom_call.1} parent=11 // pred_check
          %p119 = pneg %p48
        $region14: #{tpu_custom_call.1} parent=11 // pred_check_branch
          %121 = sbr.rel (%p119) target = $region16
        $region15: #{tpu_custom_call.1} parent=11 // pred_region
          _
        $region16: #{tpu_custom_call.1} parent=11 // pred_fallthru
          _
      $region12: #{tpu_custom_call.1} parent=5 // pred_fallthru
        _
      %p122 = scmp.lt.s32.totalorder %s15, 2
      // Predicated region
      $region17: #{tpu_custom_call.1} parent=5 // pred_check
        %p123 = pneg %p122
      $region18: #{tpu_custom_call.1} parent=5 // pred_check_branch
        %125 = sbr.rel (%p123) target = $region20
      $region19: #{tpu_custom_call.1} parent=5 // pred_region
        // Predicated region
        $region21: #{tpu_custom_call.1} parent=19 // pred_check
          %p126 = pneg %p70
        $region22: #{tpu_custom_call.1} parent=19 // pred_check_branch
          %128 = sbr.rel (%p126) target = $region24
        $region23: #{tpu_custom_call.1} parent=19 // pred_region
          %s129 = sand.u32 %s60, 1
          %s130 = scalar_lea.sflag [#allocation4], %s129
          %s131 = sand.u32 %s60, 1
          %s132 = smul.addr %s131, 6
          %s133 = scalar_lea.vmem [#allocation3], %s132
          %s135 = ssub.s32 96, 96
          %136 = vsyncadd %s130, %s135
          %s137 = smul.addr %s22, 3
          %s138 = sadd.s32 %s23, %s137
          %s139 = smul.addr %s138, 32
          %s140 = scalar_lea.hbm %s1, %s139
          %s141 = sshll.u32 %s133, 4
          %s142 = int_to_ptr.vmem [resolvable:$true] %s141
          %147 = dma.hbm_to_vmem [thread:$0]  %s140, 96, %s142, %s130, 32, 32, 2
        $region24: #{tpu_custom_call.1} parent=19 // pred_fallthru
          _
      $region20: #{tpu_custom_call.1} parent=5 // pred_fallthru
        _
      %p148 = scmp.le.s32.totalorder 1, %s15
      %p149 = scmp.lt.s32.totalorder %s15, 3
      %p150 = pnand %p148, %p149
      %p151 = pneg %p150
      // Predicated region
      $region25: #{tpu_custom_call.1} parent=5 // pred_check
        _
      $region26: #{tpu_custom_call.1} parent=5 // pred_check_branch
        %153 = sbr.rel (%p150) target = $region28
      $region27: #{tpu_custom_call.1} parent=5 // pred_region
        %s154 = ssub.s32 %s15, 1
        %s155 = sand.u32 %s63, 1
        %s156 = scalar_lea.sflag [#allocation4], %s155
        %s157 = sand.u32 %s63, 1
        %s158 = smul.addr %s157, 6
        %s159 = scalar_lea.vmem [#allocation3], %s158
        // Predicated region
        $region29: #{tpu_custom_call.1} parent=27 // pred_check
          %p160 = pneg %p76
        $region30: #{tpu_custom_call.1} parent=27 // pred_check_branch
          %162 = sbr.rel (%p160) target = $region32
        $region31: #{tpu_custom_call.1} parent=27 // pred_region
          %163 = dma.done %s156, 96
        $region32: #{tpu_custom_call.1} parent=27 // pred_fallthru
          _
        %p164 = pneg %p48
        %p165 = pneg %p45
        %s166 = sand.u32 %s63, 1
        %s167 = scalar_lea.sflag [#allocation4], %s166
        %s168 = sand.u32 %s63, 1
        %s169 = smul.addr %s168, 6
        %s170 = scalar_lea.vmem [#allocation3], %s169
        %p171 = pneg %p76
        %p172 = pneg %p73
        %p173 = pneg %p104
        %p174 = pneg %p101
        %s175 = sand.u32 %s91, 1
        %s176 = scalar_lea.sflag [#allocation5], %s175
        %s177 = sand.u32 %s91, 1
        %s178 = smul.addr %s177, 6
        %s179 = scalar_lea.vmem [#allocation6], %s178
        %s180 = sld [smem:[#allocation2]]
        %v181 = vld [vmem:[%s159] sm:$0x3]
        %v182 = vmax.f32 %v181, 1e-09
        %v183 = vmin.f32 %v182, 1.0
        %s184 = scalar_lea.vmem %s159, 2 [#allocation3]
        %v185 = vld [vmem:[%s184] sm:$0x3]
        %v186 = vmax.f32 %v185, 1e-09
        %v187 = vmin.f32 %v186, 1.0
        %s188 = scalar_lea.vmem %s159, 4 [#allocation3]
        %v189 = vld [vmem:[%s188] sm:$0x3]
        %v190 = vmax.f32 %v189, 1e-09
        %v191 = vmin.f32 %v190, 1.0
        %v192 = vmax.f32 %v183, %v187
        %v193 = vmax.f32 %v192, %v191
        %v194 = vmin.f32 %v183, %v187
        %v195 = vmin.f32 %v194, %v191
        %v196 = vsub.f32 %v193, %v195
        %vm197 = vcmp.eq.f32.partialorder %v196, 0.0
        %v198 = vsel %vm197, 1.0, %v196
        %v199 = vrcp.pop %v198
        %v200 = vmul.f32 1.0, %v199
        %v201 = vsel %vm197, 0.0, %v200
        %vm202 = vcmp.eq.f32.partialorder %v183, %v193
        %v203 = vsel %vm202, 1, 0
        %v204 = vcvt.s32.f32 %v203
        %vm205 = vcmp.eq.f32.partialorder %v187, %v193
        %v206 = vsel %vm205, 1, 0
        %v207 = vcvt.s32.f32 %v206
        %vm208 = vcmp.eq.f32.partialorder %v191, %v193
        %v209 = vsel %vm208, 1, 0
        %v210 = vcvt.s32.f32 %v209
        %v211 = vsub.f32 %v187, %v191
        %v212 = vmul.f32 %v211, %v201
        %v213 = vmul.f32 %v212, %v204
        %v214 = vsub.f32 %v191, %v183
        %v215 = vmul.f32 %v214, %v201
        %v216 = vadd.f32 %v215, 2.0
        %v217 = vmul.f32 %v216, %v207
        %v218 = vadd.f32 %v213, %v217
        %v219 = vsub.f32 %v183, %v187
        %v220 = vmul.f32 %v219, %v201
        %v221 = vadd.f32 %v220, 4.0
        %v222 = vmul.f32 %v221, %v210
        %v223 = vadd.f32 %v218, %v222
        %v224 = vstv %s180
        %v225 = vsel %vm197, %v224, %v223
        %v226 = vmul.f32 %v225, 0.16666667
        %vm227 = vcmp.lt.f32.partialorder %v226, 0.0
        %v228 = vadd.f32 %v226, 1.0
        %v229 = vsel %vm227, %v228, %v226
        %v230 = vrcp.pop %v193
        %v231 = vmul.f32 1.0, %v230
        %v232 = vmul.f32 %v196, %v231
        %v233 = vmax.f32 %v229, 1e-09
        %v234 = vmin.f32 %v233, 1.0
        %235 = vst [vmem:[%s179] sm:$0x3] %v234
        %v236 = vmax.f32 %v232, 1e-09
        %v237 = vmin.f32 %v236, 1.0
        %s238 = scalar_lea.vmem %s179, 2 [#allocation6]
        %239 = vst [vmem:[%s238] sm:$0x3] %v237
        %v240 = vmax.f32 %v193, 1e-09
        %v241 = vmin.f32 %v240, 1.0
        %s242 = scalar_lea.vmem %s179, 4 [#allocation6]
        %243 = vst [vmem:[%s242] sm:$0x3] %v241
        %s244 = sand.u32 %s91, 1
        %s245 = scalar_lea.sflag [#allocation5], %s244
        %s246 = sand.u32 %s91, 1
        %s247 = smul.addr %s246, 6
        %s248 = scalar_lea.vmem [#allocation6], %s247
        // Predicated region
        $region33: #{tpu_custom_call.1} parent=27 // pred_check
          %p249 = pneg %p101
        $region34: #{tpu_custom_call.1} parent=27 // pred_check_branch
          %251 = sbr.rel (%p249) target = $region36
        $region35: #{tpu_custom_call.1} parent=27 // pred_region
          %s253 = ssub.s32 96, 96
          %254 = vsyncadd %s245, %s253
          %s255 = smul.addr %s24, 3
          %s256 = sadd.s32 %s25, %s255
          %s257 = smul.addr %s256, 32
          %s258 = scalar_lea.hbm %s2, %s257
          %s259 = sshll.u32 %s248, 4
          %s260 = int_to_ptr.vmem [resolvable:$true] %s259
          %265 = dma.vmem_to_hbm [thread:$0]  %s260, 96, %s258, %s245, 32, 32, 2
        $region36: #{tpu_custom_call.1} parent=27 // pred_fallthru
          _
      $region28: #{tpu_custom_call.1} parent=5 // pred_fallthru
        _
      %p266 = scmp.le.s32.totalorder 2, %s15
      // Predicated region
      $region37: #{tpu_custom_call.1} parent=5 // pred_check
        %p267 = pneg %p266
      $region38: #{tpu_custom_call.1} parent=5 // pred_check_branch
        %269 = sbr.rel (%p267) target = $region40
      $region39: #{tpu_custom_call.1} parent=5 // pred_region
        %s270 = ssub.s32 %s15, 2
        // Predicated region
        $region41: #{tpu_custom_call.1} parent=39 // pred_check
          %p271 = pneg %p107
        $region42: #{tpu_custom_call.1} parent=39 // pred_check_branch
          %273 = sbr.rel (%p271) target = $region44
        $region43: #{tpu_custom_call.1} parent=39 // pred_region
          %s274 = sand.u32 %s92, 1
          %s275 = scalar_lea.sflag [#allocation5], %s274
          %s276 = sand.u32 %s92, 1
          %s277 = smul.addr %s276, 6
          %s278 = scalar_lea.vmem [#allocation6], %s277
          %279 = dma.done %s275, 96
        $region44: #{tpu_custom_call.1} parent=39 // pred_fallthru
          _
      $region40: #{tpu_custom_call.1} parent=5 // pred_fallthru
        _
    $region6: #{tpu_custom_call.1} parent=1 // loop_footer
      %s19 = sadd.s32 1, %s15
    $region7: #{tpu_custom_call.1} parent=1 // loop_footer_branch
      %14 = sbr.rel target = $region3
    $region8: #{tpu_custom_call.1} parent=1 // loop_exit
      _
    %280 = vsyncpa [#allocation4], 1
    %s281 = scalar_lea.sflag [#allocation4], 1
    %282 = vsyncpa %s281, 1
    %283 = vsyncpa [#allocation5], 1
    %s284 = scalar_lea.sflag [#allocation5], 1
    %285 = vsyncpa %s284, 1

</llo_original>
